<compile_context>
chip_gen: v6e
topology: v6e:2x2x1
jax: 0.10.0
libtpu: 0.0.40
codegen_flags: <defaults>
</compile_context>

<pallas_src>
import functools

import jax
import jax.numpy as jnp
from jax.experimental import pallas as pl
from jax.experimental.pallas import tpu as pltpu

_HALF_LOG_2PI = 0.9189385332046727
_SHIFT = 6  # recurrence shift for digamma / lgamma asymptotic series


def _digamma(x):
    # valid for x > 0: shift up by _SHIFT, then asymptotic series.
    # reciprocals routed to the EUP slot (approx=True).
    acc = jnp.zeros_like(x)
    z = x
    for _ in range(_SHIFT):
        acc = acc + pl.reciprocal(z, approx=True)
        z = z + 1.0
    inv = pl.reciprocal(z, approx=True)
    inv2 = inv * inv
    series = (jnp.log(z) - 0.5 * inv
              - inv2 * (1.0 / 12.0 - inv2 * (1.0 / 120.0 - inv2 * (1.0 / 252.0))))
    return series - acc


def _lgamma(x):
    # valid for x > 0: shift up by _SHIFT, then Stirling series.
    acc = jnp.zeros_like(x)
    z = x
    for _ in range(_SHIFT):
        acc = acc + jnp.log(z)
        z = z + 1.0
    inv = pl.reciprocal(z, approx=True)
    inv2 = inv * inv
    series = ((z - 0.5) * jnp.log(z) - z + _HALF_LOG_2PI
              + inv * (1.0 / 12.0 - inv2 * (1.0 / 360.0 - inv2 * (1.0 / 1260.0))))
    return series - acc


def _bayesian_loss_kernel(alpha_ref, y_ref, x_ref, yhat_ref, out_ref, acc_ref,
                          *, entropy_weight, reduction, tile_rows, total_rows,
                          tiles_per_core):
    p = pl.program_id(0)          # core / parallel axis
    i = pl.program_id(1)          # MSE tile axis (reduction, "arbitrary")

    @pl.when(i == 0)
    def _init():
        acc_ref[...] = jnp.zeros_like(acc_ref)

    # ---------------- streaming sum of squared residuals (mem-bound) ---------
    t = p * tiles_per_core + i                               # global tile idx (unclamped)
    row = jax.lax.broadcasted_iota(jnp.int32, (tile_rows, 1), 0)
    valid = (t * tile_rows + row) < total_rows               # mask ragged / duplicate tiles
    diff = x_ref[...] - yhat_ref[...]
    sq = jnp.where(valid, diff * diff, 0.0)
    acc_ref[...] += jnp.sum(sq, axis=0, keepdims=True)       # per-lane partials (1, 128)

    # ---------------- finalize (once per core) --------------------------------
    @pl.when(i == pl.num_programs(1) - 1)
    def _finalize():
        lane = jax.lax.broadcasted_iota(jnp.int32, (1, 128), 1)
        ssq = jnp.sum(acc_ref[...])                          # single cross-lane reduce
        out_ref[0] = jnp.where(lane == 0, ssq, 0.0)

        @pl.when(p == 0)
        def _alpha_math():
            # Dirichlet posterior math, computed exactly once (core 0, last tile).
            alpha = jnp.maximum(alpha_ref[...], 1e-6)        # (C, B): batch on lanes
            y = y_ref[...]                                   # (1, B) int32 class ids
            C, B = alpha.shape

            alpha0 = jnp.sum(alpha, axis=0, keepdims=True)   # (1, B)
            dg_alpha = _digamma(alpha)                       # (C, B)
            dg_alpha0 = _digamma(alpha0)                     # (1, B)

            # one-hot gather of digamma(alpha[y_b, b]) via sublane iota compare
            onehot = jax.lax.broadcasted_iota(jnp.int32, (C, B), 0) == y
            ell = (jnp.sum(jnp.where(onehot, dg_alpha, 0.0), axis=0, keepdims=True)
                   - dg_alpha0)                              # (1, B)
            nll = -ell

            # Dirichlet entropy: log B(a) + (a0-K) psi(a0) - sum (a_j-1) psi(a_j)
            log_beta = jnp.sum(_lgamma(alpha), axis=0, keepdims=True) - _lgamma(alpha0)
            entropy = (log_beta
                       + (alpha0 - float(C)) * dg_alpha0
                       - jnp.sum((alpha - 1.0) * dg_alpha, axis=0, keepdims=True))

            per_sample_loss = nll - entropy_weight * entropy

            if reduction == "mean":
                red_loss = jnp.sum(per_sample_loss) / float(B)
            else:  # "sum" (PyTorch module still averages nll for 'sum')
                red_loss = jnp.sum(per_sample_loss)
            red_nll = jnp.sum(nll) / float(B)
            # TODO(synk): reduction='none' (per-sample loss + per-element MSE) is
            # not implemented in this kernel.

            out_ref[0] = (out_ref[0]
                          + jnp.where(lane == 1, red_loss, 0.0)
                          + jnp.where(lane == 2, red_nll, 0.0))


def bayesian_loss(alpha, y_true, X, y_hat, *,
                  entropy_weight=0.0, reconst_weight=0.0, reduction="mean",
                  tile_rows=None):
    """Returns (loss, nll, mse) as 0-d float32 arrays (matching the PyTorch tuple)."""
    assert reduction in ("mean", "sum")
    B, C = alpha.shape
    alpha_t = alpha.astype(jnp.float32).T                    # (C, B): batch on lanes
    y2d = y_true.reshape(1, B).astype(jnp.int32)

    n_elems = int(X.size)
    x_flat = X.reshape(-1).astype(jnp.float32)
    yhat_flat = y_hat.reshape(-1).astype(jnp.float32)
    rem = n_elems % 128
    if rem:
        # TODO(synk): handle the ragged 128-lane tail in-kernel instead of this
        # (small) pad; for lane-aligned inputs (like the demo) no pad happens.
        pad = 128 - rem
        x_flat = jnp.pad(x_flat, (0, pad))
        yhat_flat = jnp.pad(yhat_flat, (0, pad))
    rows = x_flat.size // 128
    x2d = x_flat.reshape(rows, 128)                          # reshape only: free
    yhat2d = yhat_flat.reshape(rows, 128)

    # Row-tile size: big enough for ~85%+ of HBM roofline, small enough that
    # 2 inputs x 2 pipeline buffers stays a few MiB on every chip (v5e..v7x).
    if tile_rows is None:
        TR = 1024 if rows >= 1024 else rows
    else:
        TR = min(int(tile_rows), rows)
        if TR != rows and TR % 8 != 0:
            TR = max(8, (TR // 8) * 8)

    total_tiles = pl.cdiv(rows, TR)
    NCORES = 2                                   # v7x megacore split; sequential on 1-TC chips
    tpc = pl.cdiv(total_tiles, NCORES)           # tiles per core

    kernel = functools.partial(
        _bayesian_loss_kernel,
        entropy_weight=float(entropy_weight),
        reduction=reduction,
        tile_rows=TR,
        total_rows=rows,
        tiles_per_core=tpc,
    )

    def xy_map(p, i):
        # clamp so the (possibly) overhanging last core never indexes past the
        # array; the duplicate block is masked to zero inside the kernel.
        return (jnp.minimum(p * tpc + i, total_tiles - 1), 0)

    out = pl.pallas_call(
        kernel,
        out_shape=jax.ShapeDtypeStruct((NCORES, 1, 128), jnp.float32),
        grid=(NCORES, tpc),
        in_specs=[
            pl.BlockSpec((C, B), lambda p, i: (0, 0)),       # alpha^T, resident
            pl.BlockSpec((1, B), lambda p, i: (0, 0)),       # labels, resident
            pl.BlockSpec((TR, 128), xy_map),                 # X tiles (pipelined)
            pl.BlockSpec((TR, 128), xy_map),                 # y_hat tiles (pipelined)
        ],
        out_specs=pl.BlockSpec((1, 1, 128), lambda p, i: (p, 0, 0)),
        scratch_shapes=[pltpu.VMEM((1, 128), jnp.float32)],  # per-lane ssq accumulator
        compiler_params=pltpu.CompilerParams(
            dimension_semantics=("parallel", "arbitrary"),
            vmem_limit_bytes=32 * 1024 * 1024,
        ),
    )(alpha_t, y2d, x2d, yhat2d)

    # Combine the per-core partials (a handful of scalar ops).
    ssq = out[0, 0, 0] + out[1, 0, 0]
    mse = ssq / jnp.float32(n_elems)
    loss = out[0, 0, 1] + jnp.float32(reconst_weight) * mse
    nll = out[0, 0, 2]
    return loss, nll, mse


def _reference(alpha, y_true, X, y_hat, entropy_weight, reconst_weight):
    from jax.scipy.special import digamma, gammaln
    alpha = alpha.astype(jnp.float32)
    a0 = alpha.sum(-1)
    ell = digamma(alpha[jnp.arange(alpha.shape[0]), y_true]) - digamma(a0)
    nll = -ell
    K = alpha.shape[-1]
    log_beta = gammaln(alpha).sum(-1) - gammaln(a0)
    ent = log_beta + (a0 - K) * digamma(a0) - ((alpha - 1.0) * digamma(alpha)).sum(-1)
    loss = nll - entropy_weight * ent
    mse = jnp.mean((X - y_hat) ** 2)
    return loss.mean() + reconst_weight * mse, nll.mean(), mse


if __name__ == "__main__":
    key = jax.random.PRNGKey(0)
    k1, k2, k3, k4 = jax.random.split(key, 4)

    B, C = 8, 4
    alpha = jax.random.uniform(k1, (B, C), jnp.float32, minval=0.5, maxval=5.0)
    y_true = jax.random.randint(k2, (B,), 0, C, dtype=jnp.int32)
    # 8*4*16*18 = 9216 elements = 72 rows of 128 (lane-aligned, no pad), and with
    # tile_rows=16 the grid is (2, 3): exercises both-core split, accumulation,
    # the ragged last tile and the masked duplicate tile on core 1.
    X = jax.random.normal(k3, (B, 4, 16, 18), jnp.float32)
    y_hat = X + 0.1 * jax.random.normal(k4, (B, 4, 16, 18), jnp.float32)

    entropy_weight, reconst_weight = 1e-4, 0.5   # deterministic "module params"

    loss, nll, mse = bayesian_loss(
        alpha, y_true, X, y_hat,
        entropy_weight=entropy_weight, reconst_weight=reconst_weight,
        reduction="mean", tile_rows=16,
    )
    jax.block_until_ready((loss, nll, mse))

    ref_loss, ref_nll, ref_mse = _reference(alpha, y_true, X, y_hat,
                                            entropy_weight, reconst_weight)
    assert jnp.allclose(loss, ref_loss, rtol=1e-3, atol=1e-3), (loss, ref_loss)
    assert jnp.allclose(nll, ref_nll, rtol=1e-3, atol=1e-3), (nll, ref_nll)
    assert jnp.allclose(mse, ref_mse, rtol=1e-3, atol=1e-3), (mse, ref_mse)

    print("KERNEL_OK")
</pallas_src>

<mosaic_0001>
module attributes {stable_mosaic.version = 11 : i64} {
  func.func @_bayesian_loss_kernel(%arg0: i32, %arg1: i32, %arg2: memref<4x8xf32, #tpu.memory_space<vmem>>, %arg3: memref<1x8xi32, #tpu.memory_space<vmem>>, %arg4: memref<16x128xf32, #tpu.memory_space<vmem>>, %arg5: memref<16x128xf32, #tpu.memory_space<vmem>>, %arg6: memref<1x1x128xf32, #tpu.memory_space<vmem>>, %arg7: memref<1x128xf32, #tpu.memory_space<vmem>>) attributes {dimension_semantics = [#tpu.dimension_semantics<parallel>, #tpu.dimension_semantics<arbitrary>], iteration_bounds = array<i64: 2, 3>, scalar_prefetch = 0 : i64, scratch_operands = 1 : i64, tpu.core_type = #tpu.core_type<tc>, window_params = [{pipeline_mode = #tpu.pipeline_mode<synchronous>, transform_indices = @transform_0, window_bounds = array<i64: 4, 8>}, {pipeline_mode = #tpu.pipeline_mode<synchronous>, transform_indices = @transform_1, window_bounds = array<i64: 1, 8>}, {transform_indices = @transform_2, window_bounds = array<i64: 16, 128>}, {transform_indices = @transform_3, window_bounds = array<i64: 16, 128>}, {transform_indices = @transform_4, window_bounds = array<i64: 1, 1, 128>}]} {
    %c0_i32 = arith.constant 0 : i32
    %0 = arith.cmpi eq, %arg1, %c0_i32 : i32
    %1 = arith.extui %0 : i1 to i32
    %c0_i32_0 = arith.constant 0 : i32
    %2 = arith.cmpi ne, %1, %c0_i32_0 : i32
    scf.if %2 {
      %cst_10 = arith.constant 0.000000e+00 : f32
      %27 = vector.broadcast %cst_10 : f32 to vector<1x128xf32>
      %c0_11 = arith.constant 0 : index
      %c0_12 = arith.constant 0 : index
      %28 = vector.load %arg7[%c0_11, %c0_12] : memref<1x128xf32, #tpu.memory_space<vmem>>, vector<1x128xf32>
      tpu.vector_store %arg7[%c0_11, %c0_12], %27 {strides = array<i32>} : memref<1x128xf32, #tpu.memory_space<vmem>>, vector<1x128xf32>,
    } else {
    }
    %c3_i32 = arith.constant 3 : i32
    %3 = arith.muli %arg0, %c3_i32 : i32
    %4 = arith.addi %3, %arg1 : i32
    %5 = tpu.iota {dimensions = array<i32: 0>} : vector<16x1xi32>
    %c16_i32 = arith.constant 16 : i32
    %6 = arith.muli %4, %c16_i32 : i32
    %7 = vector.broadcast %6 : i32 to vector<16x1xi32>
    %8 = arith.addi %7, %5 : vector<16x1xi32>
    %c72_i32 = arith.constant 72 : i32
    %9 = vector.broadcast %c72_i32 : i32 to vector<16x1xi32>
    %10 = arith.cmpi slt, %8, %9 : vector<16x1xi32>
    %c0 = arith.constant 0 : index
    %c0_1 = arith.constant 0 : index
    %11 = vector.load %arg4[%c0, %c0_1] : memref<16x128xf32, #tpu.memory_space<vmem>>, vector<16x128xf32>
    %c0_2 = arith.constant 0 : index
    %c0_3 = arith.constant 0 : index
    %12 = vector.load %arg5[%c0_2, %c0_3] : memref<16x128xf32, #tpu.memory_space<vmem>>, vector<16x128xf32>
    %13 = arith.subf %11, %12 : vector<16x128xf32>
    %14 = arith.mulf %13, %13 : vector<16x128xf32>
    %cst = arith.constant 0.000000e+00 : f32
    %15 = vector.shape_cast %10 : vector<16x1xi1> to vector<16x1xi1>
    %16 = vector.broadcast %15 : vector<16x1xi1> to vector<16x128xi1>
    %17 = vector.broadcast %cst : f32 to vector<16x128xf32>
    %18 = arith.select %16, %14, %17 : vector<16x128xi1>, vector<16x128xf32>
    %c0_4 = arith.constant 0 : index
    %c0_5 = arith.constant 0 : index
    %19 = vector.load %arg7[%c0_4, %c0_5] : memref<1x128xf32, #tpu.memory_space<vmem>>, vector<1x128xf32>
    %cst_6 = arith.constant dense<0.000000e+00> : vector<128xf32>
    %20 = vector.multi_reduction <add>, %18, %cst_6 [0] : vector<16x128xf32> to vector<128xf32>
    %21 = vector.shape_cast %20 : vector<128xf32> to vector<1x128xf32>
    %22 = arith.addf %19, %21 : vector<1x128xf32>
    %c0_7 = arith.constant 0 : index
    %c0_8 = arith.constant 0 : index
    %23 = vector.load %arg7[%c0_7, %c0_8] : memref<1x128xf32, #tpu.memory_space<vmem>>, vector<1x128xf32>
    tpu.vector_store %arg7[%c0_7, %c0_8], %22 {strides = array<i32>} : memref<1x128xf32, #tpu.memory_space<vmem>>, vector<1x128xf32>,
    %c2_i32 = arith.constant 2 : i32
    %24 = arith.cmpi eq, %arg1, %c2_i32 : i32
    %25 = arith.extui %24 : i1 to i32
    %c0_i32_9 = arith.constant 0 : i32
    %26 = arith.cmpi ne, %25, %c0_i32_9 : i32
    scf.if %26 {
      %27 = tpu.iota {dimensions = array<i32: 1>} : vector<1x128xi32>
      %c0_10 = arith.constant 0 : index
      %c0_11 = arith.constant 0 : index
      %28 = vector.load %arg7[%c0_10, %c0_11] : memref<1x128xf32, #tpu.memory_space<vmem>>, vector<1x128xf32>
      %29 = vector.shape_cast %28 : vector<1x128xf32> to vector<1x1x128xf32>
      %cst_12 = arith.constant dense<0.000000e+00> : vector<1xf32>
      %30 = vector.multi_reduction <add>, %29, %cst_12 [1, 2] : vector<1x1x128xf32> to vector<1xf32>
      %31 = vector.shape_cast %30 : vector<1xf32> to vector<1x1x1xf32>
      %32 = vector.extract %31[0, 0, 0] : f32 from vector<1x1x1xf32>
      %c0_i32_13 = arith.constant 0 : i32
      %33 = vector.broadcast %c0_i32_13 : i32 to vector<1x128xi32>
      %34 = arith.cmpi eq, %27, %33 : vector<1x128xi32>
      %cst_14 = arith.constant 0.000000e+00 : f32
      %35 = vector.broadcast %32 : f32 to vector<1x128xf32>
      %36 = vector.broadcast %cst_14 : f32 to vector<1x128xf32>
      %37 = arith.select %34, %35, %36 : vector<1x128xi1>, vector<1x128xf32>
      %c0_15 = arith.constant 0 : index
      %c0_16 = arith.constant 0 : index
      %c0_17 = arith.constant 0 : index
      %38 = vector.load %arg6[%c0_15, %c0_16, %c0_17] : memref<1x1x128xf32, #tpu.memory_space<vmem>>, vector<1x1x128xf32>
      %39 = vector.shape_cast %38 : vector<1x1x128xf32> to vector<1x128xf32>
      %40 = vector.shape_cast %37 : vector<1x128xf32> to vector<1x1x128xf32>
      tpu.vector_store %arg6[%c0_15, %c0_16, %c0_17], %40 {strides = array<i32>} : memref<1x1x128xf32, #tpu.memory_space<vmem>>, vector<1x1x128xf32>,
      %c0_i32_18 = arith.constant 0 : i32
      %41 = arith.cmpi eq, %arg0, %c0_i32_18 : i32
      %42 = arith.extui %41 : i1 to i32
      %c0_i32_19 = arith.constant 0 : i32
      %43 = arith.cmpi ne, %42, %c0_i32_19 : i32
      scf.if %43 {
        %c0_20 = arith.constant 0 : index
        %c0_21 = arith.constant 0 : index
        %44 = vector.load %arg2[%c0_20, %c0_21] : memref<4x8xf32, #tpu.memory_space<vmem>>, vector<4x8xf32>
        %cst_22 = arith.constant 9.99999997E-7 : f32
        %45 = vector.broadcast %cst_22 : f32 to vector<4x8xf32>
        %46 = arith.maximumf %44, %45 : vector<4x8xf32>
        %c0_23 = arith.constant 0 : index
        %c0_24 = arith.constant 0 : index
        %47 = vector.load %arg3[%c0_23, %c0_24] : memref<1x8xi32, #tpu.memory_space<vmem>>, vector<1x8xi32>
        %cst_25 = arith.constant dense<0.000000e+00> : vector<8xf32>
        %48 = vector.multi_reduction <add>, %46, %cst_25 [0] : vector<4x8xf32> to vector<8xf32>
        %49 = vector.shape_cast %48 : vector<8xf32> to vector<1x8xf32>
        %cst_26 = arith.constant 0.000000e+00 : f32
        %50 = vector.broadcast %cst_26 : f32 to vector<4x8xf32>
        %51 = tpu.reciprocal %46 {approx = true} : vector<4x8xf32> -> vector<4x8xf32>
        %52 = arith.addf %50, %51 : vector<4x8xf32>
        %cst_27 = arith.constant 1.000000e+00 : f32
        %53 = vector.broadcast %cst_27 : f32 to vector<4x8xf32>
        %54 = arith.addf %46, %53 : vector<4x8xf32>
        %55 = tpu.reciprocal %54 {approx = true} : vector<4x8xf32> -> vector<4x8xf32>
        %56 = arith.addf %52, %55 : vector<4x8xf32>
        %cst_28 = arith.constant 1.000000e+00 : f32
        %57 = vector.broadcast %cst_28 : f32 to vector<4x8xf32>
        %58 = arith.addf %54, %57 : vector<4x8xf32>
        %59 = tpu.reciprocal %58 {approx = true} : vector<4x8xf32> -> vector<4x8xf32>
        %60 = arith.addf %56, %59 : vector<4x8xf32>
        %cst_29 = arith.constant 1.000000e+00 : f32
        %61 = vector.broadcast %cst_29 : f32 to vector<4x8xf32>
        %62 = arith.addf %58, %61 : vector<4x8xf32>
        %63 = tpu.reciprocal %62 {approx = true} : vector<4x8xf32> -> vector<4x8xf32>
        %64 = arith.addf %60, %63 : vector<4x8xf32>
        %cst_30 = arith.constant 1.000000e+00 : f32
        %65 = vector.broadcast %cst_30 : f32 to vector<4x8xf32>
        %66 = arith.addf %62, %65 : vector<4x8xf32>
        %67 = tpu.reciprocal %66 {approx = true} : vector<4x8xf32> -> vector<4x8xf32>
        %68 = arith.addf %64, %67 : vector<4x8xf32>
        %cst_31 = arith.constant 1.000000e+00 : f32
        %69 = vector.broadcast %cst_31 : f32 to vector<4x8xf32>
        %70 = arith.addf %66, %69 : vector<4x8xf32>
        %71 = tpu.reciprocal %70 {approx = true} : vector<4x8xf32> -> vector<4x8xf32>
        %72 = arith.addf %68, %71 : vector<4x8xf32>
        %cst_32 = arith.constant 1.000000e+00 : f32
        %73 = vector.broadcast %cst_32 : f32 to vector<4x8xf32>
        %74 = arith.addf %70, %73 : vector<4x8xf32>
        %75 = tpu.reciprocal %74 {approx = true} : vector<4x8xf32> -> vector<4x8xf32>
        %76 = arith.mulf %75, %75 : vector<4x8xf32>
        %77 = math.log %74 : vector<4x8xf32>
        %cst_33 = arith.constant 5.000000e-01 : f32
        %78 = vector.broadcast %cst_33 : f32 to vector<4x8xf32>
        %79 = arith.mulf %78, %75 : vector<4x8xf32>
        %80 = arith.subf %77, %79 : vector<4x8xf32>
        %cst_34 = arith.constant 0.0039682542 : f32
        %81 = vector.broadcast %cst_34 : f32 to vector<4x8xf32>
        %82 = arith.mulf %76, %81 : vector<4x8xf32>
        %cst_35 = arith.constant 0.00833333377 : f32
        %83 = vector.broadcast %cst_35 : f32 to vector<4x8xf32>
        %84 = arith.subf %83, %82 : vector<4x8xf32>
        %85 = arith.mulf %76, %84 : vector<4x8xf32>
        %cst_36 = arith.constant 0.0833333358 : f32
        %86 = vector.broadcast %cst_36 : f32 to vector<4x8xf32>
        %87 = arith.subf %86, %85 : vector<4x8xf32>
        %88 = arith.mulf %76, %87 : vector<4x8xf32>
        %89 = arith.subf %80, %88 : vector<4x8xf32>
        %90 = arith.subf %89, %72 : vector<4x8xf32>
        %cst_37 = arith.constant 0.000000e+00 : f32
        %91 = vector.broadcast %cst_37 : f32 to vector<1x8xf32>
        %92 = tpu.reciprocal %49 {approx = true} : vector<1x8xf32> -> vector<1x8xf32>
        %93 = arith.addf %91, %92 : vector<1x8xf32>
        %cst_38 = arith.constant 1.000000e+00 : f32
        %94 = vector.broadcast %cst_38 : f32 to vector<1x8xf32>
        %95 = arith.addf %49, %94 : vector<1x8xf32>
        %96 = tpu.reciprocal %95 {approx = true} : vector<1x8xf32> -> vector<1x8xf32>
        %97 = arith.addf %93, %96 : vector<1x8xf32>
        %cst_39 = arith.constant 1.000000e+00 : f32
        %98 = vector.broadcast %cst_39 : f32 to vector<1x8xf32>
        %99 = arith.addf %95, %98 : vector<1x8xf32>
        %100 = tpu.reciprocal %99 {approx = true} : vector<1x8xf32> -> vector<1x8xf32>
        %101 = arith.addf %97, %100 : vector<1x8xf32>
        %cst_40 = arith.constant 1.000000e+00 : f32
        %102 = vector.broadcast %cst_40 : f32 to vector<1x8xf32>
        %103 = arith.addf %99, %102 : vector<1x8xf32>
        %104 = tpu.reciprocal %103 {approx = true} : vector<1x8xf32> -> vector<1x8xf32>
        %105 = arith.addf %101, %104 : vector<1x8xf32>
        %cst_41 = arith.constant 1.000000e+00 : f32
        %106 = vector.broadcast %cst_41 : f32 to vector<1x8xf32>
        %107 = arith.addf %103, %106 : vector<1x8xf32>
        %108 = tpu.reciprocal %107 {approx = true} : vector<1x8xf32> -> vector<1x8xf32>
        %109 = arith.addf %105, %108 : vector<1x8xf32>
        %cst_42 = arith.constant 1.000000e+00 : f32
        %110 = vector.broadcast %cst_42 : f32 to vector<1x8xf32>
        %111 = arith.addf %107, %110 : vector<1x8xf32>
        %112 = tpu.reciprocal %111 {approx = true} : vector<1x8xf32> -> vector<1x8xf32>
        %113 = arith.addf %109, %112 : vector<1x8xf32>
        %cst_43 = arith.constant 1.000000e+00 : f32
        %114 = vector.broadcast %cst_43 : f32 to vector<1x8xf32>
        %115 = arith.addf %111, %114 : vector<1x8xf32>
        %116 = tpu.reciprocal %115 {approx = true} : vector<1x8xf32> -> vector<1x8xf32>
        %117 = arith.mulf %116, %116 : vector<1x8xf32>
        %118 = math.log %115 : vector<1x8xf32>
        %cst_44 = arith.constant 5.000000e-01 : f32
        %119 = vector.broadcast %cst_44 : f32 to vector<1x8xf32>
        %120 = arith.mulf %119, %116 : vector<1x8xf32>
        %121 = arith.subf %118, %120 : vector<1x8xf32>
        %cst_45 = arith.constant 0.0039682542 : f32
        %122 = vector.broadcast %cst_45 : f32 to vector<1x8xf32>
        %123 = arith.mulf %117, %122 : vector<1x8xf32>
        %cst_46 = arith.constant 0.00833333377 : f32
        %124 = vector.broadcast %cst_46 : f32 to vector<1x8xf32>
        %125 = arith.subf %124, %123 : vector<1x8xf32>
        %126 = arith.mulf %117, %125 : vector<1x8xf32>
        %cst_47 = arith.constant 0.0833333358 : f32
        %127 = vector.broadcast %cst_47 : f32 to vector<1x8xf32>
        %128 = arith.subf %127, %126 : vector<1x8xf32>
        %129 = arith.mulf %117, %128 : vector<1x8xf32>
        %130 = arith.subf %121, %129 : vector<1x8xf32>
        %131 = arith.subf %130, %113 : vector<1x8xf32>
        %132 = tpu.iota {dimensions = array<i32: 0>} : vector<4x8xi32>
        %133 = vector.broadcast %47 : vector<1x8xi32> to vector<4x8xi32>
        %134 = arith.cmpi eq, %132, %133 : vector<4x8xi32>
        %cst_48 = arith.constant 0.000000e+00 : f32
        %135 = vector.broadcast %cst_48 : f32 to vector<4x8xf32>
        %136 = arith.select %134, %90, %135 : vector<4x8xi1>, vector<4x8xf32>
        %cst_49 = arith.constant dense<0.000000e+00> : vector<8xf32>
        %137 = vector.multi_reduction <add>, %136, %cst_49 [0] : vector<4x8xf32> to vector<8xf32>
        %138 = vector.shape_cast %137 : vector<8xf32> to vector<1x8xf32>
        %139 = arith.subf %138, %131 : vector<1x8xf32>
        %cst_50 = arith.constant 0.000000e+00 : f32
        %140 = vector.broadcast %cst_50 : f32 to vector<1x8xf32>
        %141 = arith.subf %140, %139 : vector<1x8xf32>
        %cst_51 = arith.constant 0.000000e+00 : f32
        %142 = vector.broadcast %cst_51 : f32 to vector<4x8xf32>
        %143 = math.log %46 : vector<4x8xf32>
        %144 = arith.addf %142, %143 : vector<4x8xf32>
        %cst_52 = arith.constant 1.000000e+00 : f32
        %145 = vector.broadcast %cst_52 : f32 to vector<4x8xf32>
        %146 = arith.addf %46, %145 : vector<4x8xf32>
        %147 = math.log %146 : vector<4x8xf32>
        %148 = arith.addf %144, %147 : vector<4x8xf32>
        %cst_53 = arith.constant 1.000000e+00 : f32
        %149 = vector.broadcast %cst_53 : f32 to vector<4x8xf32>
        %150 = arith.addf %146, %149 : vector<4x8xf32>
        %151 = math.log %150 : vector<4x8xf32>
        %152 = arith.addf %148, %151 : vector<4x8xf32>
        %cst_54 = arith.constant 1.000000e+00 : f32
        %153 = vector.broadcast %cst_54 : f32 to vector<4x8xf32>
        %154 = arith.addf %150, %153 : vector<4x8xf32>
        %155 = math.log %154 : vector<4x8xf32>
        %156 = arith.addf %152, %155 : vector<4x8xf32>
        %cst_55 = arith.constant 1.000000e+00 : f32
        %157 = vector.broadcast %cst_55 : f32 to vector<4x8xf32>
        %158 = arith.addf %154, %157 : vector<4x8xf32>
        %159 = math.log %158 : vector<4x8xf32>
        %160 = arith.addf %156, %159 : vector<4x8xf32>
        %cst_56 = arith.constant 1.000000e+00 : f32
        %161 = vector.broadcast %cst_56 : f32 to vector<4x8xf32>
        %162 = arith.addf %158, %161 : vector<4x8xf32>
        %163 = math.log %162 : vector<4x8xf32>
        %164 = arith.addf %160, %163 : vector<4x8xf32>
        %cst_57 = arith.constant 1.000000e+00 : f32
        %165 = vector.broadcast %cst_57 : f32 to vector<4x8xf32>
        %166 = arith.addf %162, %165 : vector<4x8xf32>
        %167 = tpu.reciprocal %166 {approx = true} : vector<4x8xf32> -> vector<4x8xf32>
        %168 = arith.mulf %167, %167 : vector<4x8xf32>
        %cst_58 = arith.constant 5.000000e-01 : f32
        %169 = vector.broadcast %cst_58 : f32 to vector<4x8xf32>
        %170 = arith.subf %166, %169 : vector<4x8xf32>
        %171 = math.log %166 : vector<4x8xf32>
        %172 = arith.mulf %170, %171 : vector<4x8xf32>
        %173 = arith.subf %172, %166 : vector<4x8xf32>
        %cst_59 = arith.constant 0.918938517 : f32
        %174 = vector.broadcast %cst_59 : f32 to vector<4x8xf32>
        %175 = arith.addf %173, %174 : vector<4x8xf32>
        %cst_60 = arith.constant 7.93650805E-4 : f32
        %176 = vector.broadcast %cst_60 : f32 to vector<4x8xf32>
        %177 = arith.mulf %168, %176 : vector<4x8xf32>
        %cst_61 = arith.constant 0.00277777785 : f32
        %178 = vector.broadcast %cst_61 : f32 to vector<4x8xf32>
        %179 = arith.subf %178, %177 : vector<4x8xf32>
        %180 = arith.mulf %168, %179 : vector<4x8xf32>
        %cst_62 = arith.constant 0.0833333358 : f32
        %181 = vector.broadcast %cst_62 : f32 to vector<4x8xf32>
        %182 = arith.subf %181, %180 : vector<4x8xf32>
        %183 = arith.mulf %167, %182 : vector<4x8xf32>
        %184 = arith.addf %175, %183 : vector<4x8xf32>
        %185 = arith.subf %184, %164 : vector<4x8xf32>
        %cst_63 = arith.constant dense<0.000000e+00> : vector<8xf32>
        %186 = vector.multi_reduction <add>, %185, %cst_63 [0] : vector<4x8xf32> to vector<8xf32>
        %187 = vector.shape_cast %186 : vector<8xf32> to vector<1x8xf32>
        %cst_64 = arith.constant 0.000000e+00 : f32
        %188 = vector.broadcast %cst_64 : f32 to vector<1x8xf32>
        %189 = math.log %49 : vector<1x8xf32>
        %190 = arith.addf %188, %189 : vector<1x8xf32>
        %cst_65 = arith.constant 1.000000e+00 : f32
        %191 = vector.broadcast %cst_65 : f32 to vector<1x8xf32>
        %192 = arith.addf %49, %191 : vector<1x8xf32>
        %193 = math.log %192 : vector<1x8xf32>
        %194 = arith.addf %190, %193 : vector<1x8xf32>
        %cst_66 = arith.constant 1.000000e+00 : f32
        %195 = vector.broadcast %cst_66 : f32 to vector<1x8xf32>
        %196 = arith.addf %192, %195 : vector<1x8xf32>
        %197 = math.log %196 : vector<1x8xf32>
        %198 = arith.addf %194, %197 : vector<1x8xf32>
        %cst_67 = arith.constant 1.000000e+00 : f32
        %199 = vector.broadcast %cst_67 : f32 to vector<1x8xf32>
        %200 = arith.addf %196, %199 : vector<1x8xf32>
        %201 = math.log %200 : vector<1x8xf32>
        %202 = arith.addf %198, %201 : vector<1x8xf32>
        %cst_68 = arith.constant 1.000000e+00 : f32
        %203 = vector.broadcast %cst_68 : f32 to vector<1x8xf32>
        %204 = arith.addf %200, %203 : vector<1x8xf32>
        %205 = math.log %204 : vector<1x8xf32>
        %206 = arith.addf %202, %205 : vector<1x8xf32>
        %cst_69 = arith.constant 1.000000e+00 : f32
        %207 = vector.broadcast %cst_69 : f32 to vector<1x8xf32>
        %208 = arith.addf %204, %207 : vector<1x8xf32>
        %209 = math.log %208 : vector<1x8xf32>
        %210 = arith.addf %206, %209 : vector<1x8xf32>
        %cst_70 = arith.constant 1.000000e+00 : f32
        %211 = vector.broadcast %cst_70 : f32 to vector<1x8xf32>
        %212 = arith.addf %208, %211 : vector<1x8xf32>
        %213 = tpu.reciprocal %212 {approx = true} : vector<1x8xf32> -> vector<1x8xf32>
        %214 = arith.mulf %213, %213 : vector<1x8xf32>
        %cst_71 = arith.constant 5.000000e-01 : f32
        %215 = vector.broadcast %cst_71 : f32 to vector<1x8xf32>
        %216 = arith.subf %212, %215 : vector<1x8xf32>
        %217 = math.log %212 : vector<1x8xf32>
        %218 = arith.mulf %216, %217 : vector<1x8xf32>
        %219 = arith.subf %218, %212 : vector<1x8xf32>
        %cst_72 = arith.constant 0.918938517 : f32
        %220 = vector.broadcast %cst_72 : f32 to vector<1x8xf32>
        %221 = arith.addf %219, %220 : vector<1x8xf32>
        %cst_73 = arith.constant 7.93650805E-4 : f32
        %222 = vector.broadcast %cst_73 : f32 to vector<1x8xf32>
        %223 = arith.mulf %214, %222 : vector<1x8xf32>
        %cst_74 = arith.constant 0.00277777785 : f32
        %224 = vector.broadcast %cst_74 : f32 to vector<1x8xf32>
        %225 = arith.subf %224, %223 : vector<1x8xf32>
        %226 = arith.mulf %214, %225 : vector<1x8xf32>
        %cst_75 = arith.constant 0.0833333358 : f32
        %227 = vector.broadcast %cst_75 : f32 to vector<1x8xf32>
        %228 = arith.subf %227, %226 : vector<1x8xf32>
        %229 = arith.mulf %213, %228 : vector<1x8xf32>
        %230 = arith.addf %221, %229 : vector<1x8xf32>
        %231 = arith.subf %230, %210 : vector<1x8xf32>
        %232 = arith.subf %187, %231 : vector<1x8xf32>
        %cst_76 = arith.constant 4.000000e+00 : f32
        %233 = vector.broadcast %cst_76 : f32 to vector<1x8xf32>
        %234 = arith.subf %49, %233 : vector<1x8xf32>
        %235 = arith.mulf %234, %131 : vector<1x8xf32>
        %236 = arith.addf %232, %235 : vector<1x8xf32>
        %cst_77 = arith.constant 1.000000e+00 : f32
        %237 = vector.broadcast %cst_77 : f32 to vector<4x8xf32>
        %238 = arith.subf %46, %237 : vector<4x8xf32>
        %239 = arith.mulf %238, %90 : vector<4x8xf32>
        %cst_78 = arith.constant dense<0.000000e+00> : vector<8xf32>
        %240 = vector.multi_reduction <add>, %239, %cst_78 [0] : vector<4x8xf32> to vector<8xf32>
        %241 = vector.shape_cast %240 : vector<8xf32> to vector<1x8xf32>
        %242 = arith.subf %236, %241 : vector<1x8xf32>
        %cst_79 = arith.constant 9.99999974E-5 : f32
        %243 = vector.broadcast %cst_79 : f32 to vector<1x8xf32>
        %244 = arith.mulf %243, %242 : vector<1x8xf32>
        %245 = arith.subf %141, %244 : vector<1x8xf32>
        %246 = vector.shape_cast %245 : vector<1x8xf32> to vector<1x1x8xf32>
        %cst_80 = arith.constant dense<0.000000e+00> : vector<1xf32>
        %247 = vector.multi_reduction <add>, %246, %cst_80 [1, 2] : vector<1x1x8xf32> to vector<1xf32>
        %248 = vector.shape_cast %247 : vector<1xf32> to vector<1x1x1xf32>
        %249 = vector.extract %248[0, 0, 0] : f32 from vector<1x1x1xf32>
        %cst_81 = arith.constant 8.000000e+00 : f32
        %250 = arith.divf %249, %cst_81 : f32
        %251 = vector.shape_cast %141 : vector<1x8xf32> to vector<1x1x8xf32>
        %cst_82 = arith.constant dense<0.000000e+00> : vector<1xf32>
        %252 = vector.multi_reduction <add>, %251, %cst_82 [1, 2] : vector<1x1x8xf32> to vector<1xf32>
        %253 = vector.shape_cast %252 : vector<1xf32> to vector<1x1x1xf32>
        %254 = vector.extract %253[0, 0, 0] : f32 from vector<1x1x1xf32>
        %cst_83 = arith.constant 8.000000e+00 : f32
        %255 = arith.divf %254, %cst_83 : f32
        %c0_84 = arith.constant 0 : index
        %c0_85 = arith.constant 0 : index
        %c0_86 = arith.constant 0 : index
        %256 = vector.load %arg6[%c0_84, %c0_85, %c0_86] : memref<1x1x128xf32, #tpu.memory_space<vmem>>, vector<1x1x128xf32>
        %257 = vector.shape_cast %256 : vector<1x1x128xf32> to vector<1x128xf32>
        %c1_i32 = arith.constant 1 : i32
        %258 = vector.broadcast %c1_i32 : i32 to vector<1x128xi32>
        %259 = arith.cmpi eq, %27, %258 : vector<1x128xi32>
        %cst_87 = arith.constant 0.000000e+00 : f32
        %260 = vector.broadcast %250 : f32 to vector<1x128xf32>
        %261 = vector.broadcast %cst_87 : f32 to vector<1x128xf32>
        %262 = arith.select %259, %260, %261 : vector<1x128xi1>, vector<1x128xf32>
        %263 = arith.addf %257, %262 : vector<1x128xf32>
        %c2_i32_88 = arith.constant 2 : i32
        %264 = vector.broadcast %c2_i32_88 : i32 to vector<1x128xi32>
        %265 = arith.cmpi eq, %27, %264 : vector<1x128xi32>
        %cst_89 = arith.constant 0.000000e+00 : f32
        %266 = vector.broadcast %255 : f32 to vector<1x128xf32>
        %267 = vector.broadcast %cst_89 : f32 to vector<1x128xf32>
        %268 = arith.select %265, %266, %267 : vector<1x128xi1>, vector<1x128xf32>
        %269 = arith.addf %263, %268 : vector<1x128xf32>
        %c0_90 = arith.constant 0 : index
        %c0_91 = arith.constant 0 : index
        %c0_92 = arith.constant 0 : index
        %270 = vector.load %arg6[%c0_90, %c0_91, %c0_92] : memref<1x1x128xf32, #tpu.memory_space<vmem>>, vector<1x1x128xf32>
        %271 = vector.shape_cast %270 : vector<1x1x128xf32> to vector<1x128xf32>
        %272 = vector.shape_cast %269 : vector<1x128xf32> to vector<1x1x128xf32>
        tpu.vector_store %arg6[%c0_90, %c0_91, %c0_92], %272 {strides = array<i32>} : memref<1x1x128xf32, #tpu.memory_space<vmem>>, vector<1x1x128xf32>,
      } else {
      }
    } else {
    }
    return
  }
  func.func @transform_0(%arg0: i32, %arg1: i32) -> (i32, i32) {
    %c0_i32 = arith.constant 0 : i32
    %c0_i32_0 = arith.constant 0 : i32
    %c0_i32_1 = arith.constant 0 : i32
    return %c0_i32, %c0_i32_0 : i32, i32
  }
  func.func @transform_1(%arg0: i32, %arg1: i32) -> (i32, i32) {
    %c0_i32 = arith.constant 0 : i32
    %c0_i32_0 = arith.constant 0 : i32
    %c0_i32_1 = arith.constant 0 : i32
    return %c0_i32, %c0_i32_0 : i32, i32
  }
  func.func @transform_2(%arg0: i32, %arg1: i32) -> (i32, i32) {
    %c3_i32 = arith.constant 3 : i32
    %0 = arith.muli %arg0, %c3_i32 : i32
    %1 = arith.addi %0, %arg1 : i32
    %c4_i32 = arith.constant 4 : i32
    %2 = arith.minsi %1, %c4_i32 : i32
    %c0_i32 = arith.constant 0 : i32
    %c0_i32_0 = arith.constant 0 : i32
    return %2, %c0_i32 : i32, i32
  }
  func.func @transform_3(%arg0: i32, %arg1: i32) -> (i32, i32) {
    %c3_i32 = arith.constant 3 : i32
    %0 = arith.muli %arg0, %c3_i32 : i32
    %1 = arith.addi %0, %arg1 : i32
    %c4_i32 = arith.constant 4 : i32
    %2 = arith.minsi %1, %c4_i32 : i32
    %c0_i32 = arith.constant 0 : i32
    %c0_i32_0 = arith.constant 0 : i32
    return %2, %c0_i32 : i32, i32
  }
  func.func @transform_4(%arg0: i32, %arg1: i32) -> (i32, i32, i32) {
    %c0_i32 = arith.constant 0 : i32
    %c0_i32_0 = arith.constant 0 : i32
    %c0_i32_1 = arith.constant 0 : i32
    return %arg0, %c0_i32, %c0_i32_0 : i32, i32, i32
  }
}

</mosaic_0001>

<llo_original>
// kernel: tpu_custom_call.1
$region0: #{tpu_custom_call.1}
  #allocation0 [shape = 'u32[]', space=smem, size = 0x4, offset = 0x4, fixed_abs, tag = 'smem constant byte address 0x4 - core index']
  #allocation1 [shape = 'u32[144,128]{1,0:T(1,128)}', space=vmem, size = 0x12000, scoped, tag = 'internal scratch']
  #allocation2 [shape = 'f32[1,128]{1,0:T(1,128)}', space=vmem, size = 0x200, scoped, tag = 'scratch operand']
  %s0 = inlined_call_operand.hbm [shape: f32[4,8], index: 0, kind: input, shape index: {}]
  %s1 = inlined_call_operand.vmem [shape: s32[1,8], index: 1, kind: input, shape index: {}]
  %s2 = inlined_call_operand.hbm [shape: f32[72,128], index: 2, kind: input, shape index: {}]
  %s3 = inlined_call_operand.hbm [shape: f32[72,128], index: 3, kind: input, shape index: {}]
  %s4 = inlined_call_operand.hbm [shape: f32[2,1,128], index: 4, kind: output, shape index: {}]
  %s5 = sld [smem:[#allocation0]]
  $region73: #{tpu_custom_call.1} parent=0
    _
  %s7 = ssub.s32 1, %s5
  %s8 = scalar_select 0, %s7, %s5
  $region1: #{tpu_custom_call.1} parent=0
    #allocation3 [shape = 'u8[2048]{0}', space=vmem, size = 0x800, scoped, tag = 'input window, operand 0, single buffered']
    #allocation4 [shape = 's32[2]{0}', space=sflag, size = 0x8, scoped, tag = 'scoped memory for tpu_custom_call.1']
    #allocation5 [shape = 's32[2]{0}', space=sflag, size = 0x8, scoped, tag = 'scoped memory for tpu_custom_call.1']
    #allocation6 [shape = 'u8[16384]{0}', space=vmem, size = 0x4000, scoped, tag = 'input window, operand 2']
    #allocation7 [shape = 's32[2]{0}', space=sflag, size = 0x8, scoped, tag = 'scoped memory for tpu_custom_call.1']
    #allocation8 [shape = 'u8[16384]{0}', space=vmem, size = 0x4000, scoped, tag = 'input window, operand 3']
    #allocation9 [shape = 'u8[1024]{0}', space=vmem, size = 0x400, scoped, tag = 'output window, operand 0']
    %9 = vsyncpa [#allocation4], 0
    %10 = vsyncpa [#allocation7], 0
    %s11 = scalar_lea.sflag [#allocation7], 1
    %12 = vsyncpa %s11, 0
    %13 = vsyncpa [#allocation5], 0
    %s14 = scalar_lea.sflag [#allocation5], 1
    %15 = vsyncpa %s14, 0
    loop: start=0, step=1, limit=8
    $region2: #{tpu_custom_call.1} parent=1 // loop_pre_header
      _
    $region3: #{tpu_custom_call.1} parent=1 // loop_header
      %s17 = sphi 0, %s21
      %p18 = scmp.ge.s32.totalorder %s17, 8
      %s24 = sphi 0, %s36
      %s25 = sphi 0, %s32
      %s26 = sphi 0, %s24
      %s27 = sphi 0, %s25
      %s28 = sphi 0, %s26
      %s29 = sphi 0, %s27
      %s37 = sphi 0, %s37
      %s39 = sphi 0, %s37
      %s40 = sphi 0, %s39
      %s54 = sphi 0, %s40
      %s58 = sphi 0, %s58
      %s60 = sphi 0, %s58
      %s61 = sphi 0, %s60
      %s75 = sphi 0, %s61
      %s89 = sphi 0, %s91
      %s92 = sphi 0, %s89
      %s93 = sphi 0, %s92
      %s109 = sphi 0, %s93
      %s123 = sphi 0, %s125
      %s126 = sphi 0, %s123
      %s127 = sphi 0, %s126
      %s143 = sphi 0, %s127
      %s149 = sphi 0, %s151
      %s152 = sphi 0, %s149
      %s153 = sphi 0, %s152
      %s169 = sphi 0, %s153
    $region4: #{tpu_custom_call.1} parent=1 // loop_header_branch
      %20 = sbr.rel (%p18) target = $region8
    $region5: #{tpu_custom_call.1} parent=1 // loop_body
      %s22 = ssub.s32 %s17, 1
      %s23 = ssub.s32 %s17, 2
      %s30 = sadd.s32 1, %s25
      %p31 = scmp.ge.s32.totalorder %s30, 3
      %s32 = scalar_select %p31, 0, %s30
      %s33 = sadd.s32 1, %s24
      %s34 = scalar_select %p31, %s33, %s24
      %p35 = scmp.ge.s32.totalorder %s34, 2
      %s36 = scalar_select %p35, 0, %s34
      %s38 = sadd.s32 %s37, 1
      %p41 = scmp.eq.s32.totalorder %s17, 5
      %p42 = scmp.ne.s32.totalorder %s37, %s39
      %p43 = scmp.eq.s32.totalorder %s17, 0
      %p44 = por %p42, %p43
      %p45 = scmp.ne.s32.totalorder %s37, %s39
      %p46 = scmp.eq.s32.totalorder %s22, 5
      %p47 = por %p45, %p46
      %p48 = scmp.ne.s32.totalorder %s39, %s40
      %p49 = scmp.eq.s32.totalorder %s22, 0
      %p50 = por %p48, %p49
      %p51 = scmp.ne.s32.totalorder %s39, %s40
      %p52 = scmp.eq.s32.totalorder %s23, 5
      %p53 = por %p51, %p52
      %p55 = scmp.ne.s32.totalorder %s40, %s54
      %p56 = scmp.eq.s32.totalorder %s23, 0
      %p57 = por %p55, %p56
      %s59 = sadd.s32 %s58, 1
      %p62 = scmp.eq.s32.totalorder %s17, 5
      %p63 = scmp.ne.s32.totalorder %s58, %s60
      %p64 = scmp.eq.s32.totalorder %s17, 0
      %p65 = por %p63, %p64
      %p66 = scmp.ne.s32.totalorder %s58, %s60
      %p67 = scmp.eq.s32.totalorder %s22, 5
      %p68 = por %p66, %p67
      %p69 = scmp.ne.s32.totalorder %s60, %s61
      %p70 = scmp.eq.s32.totalorder %s22, 0
      %p71 = por %p69, %p70
      %p72 = scmp.ne.s32.totalorder %s60, %s61
      %p73 = scmp.eq.s32.totalorder %s23, 5
      %p74 = por %p72, %p73
      %p76 = scmp.ne.s32.totalorder %s61, %s75
      %p77 = scmp.eq.s32.totalorder %s23, 0
      %p78 = por %p76, %p77
      %s79 = smul.u32 %s24, 3
      %s80 = sadd.s32 %s79, %s25
      %p81 = scmp.lt.s32.totalorder %s80, 4
      %s82 = scalar_select %p81, %s80, 4
      %s83 = smul.u32 %s36, 3
      %s84 = sadd.s32 %s83, %s32
      %p85 = scmp.lt.s32.totalorder %s84, 4
      %s86 = scalar_select %p85, %s84, 4
      %s87 = ssub.s32 %s82, %s86
      %p88 = scmp.eq.s32.totalorder %s87, 0
      %s90 = sadd.s32 %s89, 1
      %s91 = scalar_select %p88, %s89, %s90
      %p94 = pneg %p88
      %p95 = scmp.eq.s32.totalorder %s17, 5
      %p96 = por %p94, %p95
      %p97 = scmp.ne.s32.totalorder %s89, %s92
      %p98 = scmp.eq.s32.totalorder %s17, 0
      %p99 = por %p97, %p98
      %p100 = scmp.ne.s32.totalorder %s89, %s92
      %p101 = scmp.eq.s32.totalorder %s22, 5
      %p102 = por %p100, %p101
      %p103 = scmp.ne.s32.totalorder %s92, %s93
      %p104 = scmp.eq.s32.totalorder %s22, 0
      %p105 = por %p103, %p104
      %p106 = scmp.ne.s32.totalorder %s92, %s93
      %p107 = scmp.eq.s32.totalorder %s23, 5
      %p108 = por %p106, %p107
      %p110 = scmp.ne.s32.totalorder %s93, %s109
      %p111 = scmp.eq.s32.totalorder %s23, 0
      %p112 = por %p110, %p111
      %s113 = smul.u32 %s24, 3
      %s114 = sadd.s32 %s113, %s25
      %p115 = scmp.lt.s32.totalorder %s114, 4
      %s116 = scalar_select %p115, %s114, 4
      %s117 = smul.u32 %s36, 3
      %s118 = sadd.s32 %s117, %s32
      %p119 = scmp.lt.s32.totalorder %s118, 4
      %s120 = scalar_select %p119, %s118, 4
      %s121 = ssub.s32 %s116, %s120
      %p122 = scmp.eq.s32.totalorder %s121, 0
      %s124 = sadd.s32 %s123, 1
      %s125 = scalar_select %p122, %s123, %s124
      %p128 = pneg %p122
      %p129 = scmp.eq.s32.totalorder %s17, 5
      %p130 = por %p128, %p129
      %p131 = scmp.ne.s32.totalorder %s123, %s126
      %p132 = scmp.eq.s32.totalorder %s17, 0
      %p133 = por %p131, %p132
      %p134 = scmp.ne.s32.totalorder %s123, %s126
      %p135 = scmp.eq.s32.totalorder %s22, 5
      %p136 = por %p134, %p135
      %p137 = scmp.ne.s32.totalorder %s126, %s127
      %p138 = scmp.eq.s32.totalorder %s22, 0
      %p139 = por %p137, %p138
      %p140 = scmp.ne.s32.totalorder %s126, %s127
      %p141 = scmp.eq.s32.totalorder %s23, 5
      %p142 = por %p140, %p141
      %p144 = scmp.ne.s32.totalorder %s127, %s143
      %p145 = scmp.eq.s32.totalorder %s23, 0
      %p146 = por %p144, %p145
      %s147 = ssub.s32 %s24, %s36
      %p148 = scmp.eq.s32.totalorder %s147, 0
      %s150 = sadd.s32 %s149, 1
      %s151 = scalar_select %p148, %s149, %s150
      %p154 = pneg %p148
      %p155 = scmp.eq.s32.totalorder %s17, 5
      %p156 = por %p154, %p155
      %p157 = scmp.ne.s32.totalorder %s149, %s152
      %p158 = scmp.eq.s32.totalorder %s17, 0
      %p159 = por %p157, %p158
      %p160 = scmp.ne.s32.totalorder %s149, %s152
      %p161 = scmp.eq.s32.totalorder %s22, 5
      %p162 = por %p160, %p161
      %p163 = scmp.ne.s32.totalorder %s152, %s153
      %p164 = scmp.eq.s32.totalorder %s22, 0
      %p165 = por %p163, %p164
      %p166 = scmp.ne.s32.totalorder %s152, %s153
      %p167 = scmp.eq.s32.totalorder %s23, 5
      %p168 = por %p166, %p167
      %p170 = scmp.ne.s32.totalorder %s153, %s169
      %p171 = scmp.eq.s32.totalorder %s23, 0
      %p172 = por %p170, %p171
      %p173 = scmp.le.s32.totalorder 1, %s17
      %p174 = scmp.lt.s32.totalorder %s17, 7
      %p175 = pnand %p173, %p174
      %p176 = pneg %p175
      // Predicated region
      $region9: #{tpu_custom_call.1} parent=5 // pred_check
        _
      $region10: #{tpu_custom_call.1} parent=5 // pred_check_branch
        %178 = sbr.rel (%p175) target = $region12
      $region11: #{tpu_custom_call.1} parent=5 // pred_region
        %s179 = ssub.s32 %s17, 1
        // Predicated region
        $region13: #{tpu_custom_call.1} parent=11 // pred_check
          %p180 = pneg %p50
        $region14: #{tpu_custom_call.1} parent=11 // pred_check_branch
          %182 = sbr.rel (%p180) target = $region16
        $region15: #{tpu_custom_call.1} parent=11 // pred_region
          %s184 = ssub.s32 64, 64
          %185 = vsyncadd [#allocation4], %s184
          %s187 = sshll.u32 [#allocation3], 4
          %s188 = int_to_ptr.vmem [resolvable:$true] %s187
          %190 = dma.hbm_to_vmem [thread:$0]  %s0, 64, %s188, [#allocation4]
        $region16: #{tpu_custom_call.1} parent=11 // pred_fallthru
          _
        // Predicated region
        $region17: #{tpu_custom_call.1} parent=11 // pred_check
          %p191 = pneg %p71
        $region18: #{tpu_custom_call.1} parent=11 // pred_check_branch
          %193 = sbr.rel (%p191) target = $region20
        $region19: #{tpu_custom_call.1} parent=11 // pred_region
          _
        $region20: #{tpu_custom_call.1} parent=11 // pred_fallthru
          _
      $region12: #{tpu_custom_call.1} parent=5 // pred_fallthru
        _
      %p194 = scmp.lt.s32.totalorder %s17, 6
      // Predicated region
      $region21: #{tpu_custom_call.1} parent=5 // pred_check
        %p195 = pneg %p194
      $region22: #{tpu_custom_call.1} parent=5 // pred_check_branch
        %197 = sbr.rel (%p195) target = $region24
      $region23: #{tpu_custom_call.1} parent=5 // pred_region
        // Predicated region
        $region25: #{tpu_custom_call.1} parent=23 // pred_check
          %p198 = pneg %p99
        $region26: #{tpu_custom_call.1} parent=23 // pred_check_branch
          %200 = sbr.rel (%p198) target = $region28
        $region27: #{tpu_custom_call.1} parent=23 // pred_region
          %s201 = sand.u32 %s17, 1
          %s202 = scalar_lea.sflag [#allocation7], %s201
          %s203 = sand.u32 %s89, 1
          %s204 = smul.addr %s203, 16
          %s205 = scalar_lea.vmem [#allocation6], %s204
          %s206 = smul.u32 %s24, 3
          %s207 = sadd.s32 %s206, %s25
          %p208 = scmp.lt.s32.totalorder %s207, 4
          %s209 = scalar_select %p208, %s207, 4
          %s210 = smul.u32 2, %s209
          %s211 = ssub.s32 9, %s210
          %p212 = scmp.lt.s32.totalorder %s211, 2
          %s213 = scalar_select %p212, %s211, 2
          %s214 = smul.u32 128, %s213
          %s216 = ssub.s32 256, %s214
          %217 = vsyncadd %s202, %s216
          %p218 = scmp.ne.s32.totalorder 0, %s214
          %s219 = smul.addr %s210, 128
          %s220 = scalar_lea.hbm %s2, %s219
          %s221 = smul.u32 8, %s213
          %s222 = sshll.u32 %s205, 4
          %s223 = int_to_ptr.vmem [resolvable:$true] %s222
          %s224 = sshll.u32 %s221, 4
          %228 = dma.hbm_to_vmem [thread:$0]  (%p218), %s220, %s224, %s223, %s202, 128, 128, 8
        $region28: #{tpu_custom_call.1} parent=23 // pred_fallthru
          _
        // Predicated region
        $region29: #{tpu_custom_call.1} parent=23 // pred_check
          %p229 = pneg %p133
        $region30: #{tpu_custom_call.1} parent=23 // pred_check_branch
          %231 = sbr.rel (%p229) target = $region32
        $region31: #{tpu_custom_call.1} parent=23 // pred_region
          %s232 = sand.u32 %s17, 1
          %s233 = scalar_lea.sflag [#allocation7], %s232
          %s234 = sand.u32 %s123, 1
          %s235 = smul.addr %s234, 16
          %s236 = scalar_lea.vmem [#allocation8], %s235
          %s237 = smul.u32 %s24, 3
          %s238 = sadd.s32 %s237, %s25
          %p239 = scmp.lt.s32.totalorder %s238, 4
          %s240 = scalar_select %p239, %s238, 4
          %s241 = smul.u32 2, %s240
          %s242 = ssub.s32 9, %s241
          %p243 = scmp.lt.s32.totalorder %s242, 2
          %s244 = scalar_select %p243, %s242, 2
          %s245 = smul.u32 128, %s244
          %s247 = ssub.s32 256, %s245
          %248 = vsyncadd %s233, %s247
          %p249 = scmp.ne.s32.totalorder 0, %s245
          %s250 = smul.addr %s241, 128
          %s251 = scalar_lea.hbm %s3, %s250
          %s252 = smul.u32 8, %s244
          %s253 = sshll.u32 %s236, 4
          %s254 = int_to_ptr.vmem [resolvable:$true] %s253
          %s255 = sshll.u32 %s252, 4
          %259 = dma.hbm_to_vmem [thread:$0]  (%p249), %s251, %s255, %s254, %s233, 128, 128, 8
        $region32: #{tpu_custom_call.1} parent=23 // pred_fallthru
          _
      $region24: #{tpu_custom_call.1} parent=5 // pred_fallthru
        _
      %p260 = scmp.le.s32.totalorder 1, %s17
      %p261 = scmp.lt.s32.totalorder %s17, 7
      %p262 = pnand %p260, %p261
      %p263 = pneg %p262
      // Predicated region
      $region33: #{tpu_custom_call.1} parent=5 // pred_check
        _
      $region34: #{tpu_custom_call.1} parent=5 // pred_check_branch
        %265 = sbr.rel (%p262) target = $region36
      $region35: #{tpu_custom_call.1} parent=5 // pred_region
        %s266 = ssub.s32 %s17, 1
        // Predicated region
        $region37: #{tpu_custom_call.1} parent=35 // pred_check
          %p267 = pneg %p50
        $region38: #{tpu_custom_call.1} parent=35 // pred_check_branch
          %269 = sbr.rel (%p267) target = $region40
        $region39: #{tpu_custom_call.1} parent=35 // pred_region
          %270 = dma.done [#allocation4], 64
        $region40: #{tpu_custom_call.1} parent=35 // pred_fallthru
          _
        %s271 = sand.u32 %s22, 1
        %s272 = scalar_lea.sflag [#allocation7], %s271
        %s273 = sand.u32 %s92, 1
        %s274 = smul.addr %s273, 16
        %s275 = scalar_lea.vmem [#allocation6], %s274
        // Predicated region
        $region41: #{tpu_custom_call.1} parent=35 // pred_check
          %p276 = pneg %p105
        $region42: #{tpu_custom_call.1} parent=35 // pred_check_branch
          %278 = sbr.rel (%p276) target = $region44
        $region43: #{tpu_custom_call.1} parent=35 // pred_region
          %279 = dma.done %s272, 256
        $region44: #{tpu_custom_call.1} parent=35 // pred_fallthru
          _
        %s280 = sand.u32 %s22, 1
        %s281 = scalar_lea.sflag [#allocation7], %s280
        %s282 = sand.u32 %s126, 1
        %s283 = smul.addr %s282, 16
        %s284 = scalar_lea.vmem [#allocation8], %s283
        // Predicated region
        $region45: #{tpu_custom_call.1} parent=35 // pred_check
          %p285 = pneg %p139
        $region46: #{tpu_custom_call.1} parent=35 // pred_check_branch
          %287 = sbr.rel (%p285) target = $region48
        $region47: #{tpu_custom_call.1} parent=35 // pred_region
          %288 = dma.done %s281, 256
        $region48: #{tpu_custom_call.1} parent=35 // pred_fallthru
          _
        %p289 = pneg %p50
        %p290 = pneg %p47
        %p291 = pneg %p71
        %p292 = pneg %p68
        %s293 = sand.u32 %s22, 1
        %s294 = scalar_lea.sflag [#allocation7], %s293
        %s295 = sand.u32 %s92, 1
        %s296 = smul.addr %s295, 16
        %s297 = scalar_lea.vmem [#allocation6], %s296
        %p298 = pneg %p105
        %p299 = pneg %p102
        %s300 = sand.u32 %s22, 1
        %s301 = scalar_lea.sflag [#allocation7], %s300
        %s302 = sand.u32 %s126, 1
        %s303 = smul.addr %s302, 16
        %s304 = scalar_lea.vmem [#allocation8], %s303
        %p305 = pneg %p139
        %p306 = pneg %p136
        %p307 = pneg %p165
        %p308 = pneg %p162
        %s309 = sand.u32 %s152, 1
        %s310 = scalar_lea.sflag [#allocation5], %s309
        %s311 = sand.u32 %s152, 1
        %s312 = scalar_lea.vmem [#allocation9], %s311
        %s313 = smul.u32 %s26, 3
        %s314 = sadd.s32 %s313, %s27
        %p315 = scmp.lt.s32.totalorder %s314, 4
        %s316 = scalar_select %p315, %s314, 4
        %s317 = smul.u32 2, %s316
        %s318 = ssub.s32 9, %s317
        %p319 = scmp.lt.s32.totalorder %s318, 2
        %s320 = scalar_select %p319, %s318, 2
        %s321 = smul.u32 128, %s320
        %s322 = smul.u32 %s26, 3
        %s323 = sadd.s32 %s322, %s27
        %p324 = scmp.lt.s32.totalorder %s323, 4
        %s325 = scalar_select %p324, %s323, 4
        %s326 = smul.u32 2, %s325
        %s327 = ssub.s32 9, %s326
        %p328 = scmp.lt.s32.totalorder %s327, 2
        %s329 = scalar_select %p328, %s327, 2
        %s330 = smul.u32 128, %s329
        %p331 = scmp.eq.s32.totalorder %s27, 0
        // Predicated region
        $region49: #{tpu_custom_call.1} parent=35 // pred_check
          %p332 = pneg %p331
        $region50: #{tpu_custom_call.1} parent=35 // pred_check_branch
          %334 = sbr.rel (%p332) target = $region52
        $region51: #{tpu_custom_call.1} parent=35 // pred_region
          %335 = vst [vmem:[#allocation2] sm:$0x1] 0.0
        $region52: #{tpu_custom_call.1} parent=35 // pred_fallthru
          _
        %s336 = smul.u32 %s26, 3
        %s337 = sadd.s32 %s336, %s27
        %v338 = vlaneseq
        %v339 = vshrl.u32 %v338, 7
        %v340 = vadd.s32 %v339, 8
        %s341 = smul.u32 %s337, 16
        %v342 = vstv %s341
        %v343 = vadd.s32 %v342, %v339
        %v344 = vadd.s32 %v342, %v340
        %vm345 = vcmp.lt.s32.totalorder %v343, 72
        %vm346 = vcmp.lt.s32.totalorder %v344, 72
        %v347 = vld [vmem:[%s275] sm:$0xff]
        %v348 = vld [vmem:[%s275 + $0x8] sm:$0xff]
        %v349 = vld [vmem:[%s284] sm:$0xff]
        %v350 = vld [vmem:[%s284 + $0x8] sm:$0xff]
        %v351 = vsub.f32 %v347, %v349
        %v352 = vsub.f32 %v348, %v350
        %v353 = vmul.f32 %v351, %v351
        %v354 = vmul.f32 %v352, %v352
        %v355 = vsel %vm345, 1, 0
        %v356 = vsel %vm346, 1, 0
        %vm357 = vcmp.eq.s32.totalorder %v355, 1
        %vm358 = vcmp.eq.s32.totalorder %v356, 1
        %v359 = vsel %vm357, %v353, 0.0
        %v360 = vsel %vm358, %v354, 0.0
        %v361 = vld [vmem:[#allocation2] sm:$0x1]
        %v362 = vadd.f32 %v359, %v360
        %v363 = vrot.slane %v362, 4
        %v364 = vadd.f32 %v362, %v363
        %v365 = vrot.slane %v364, 2
        %v366 = vadd.f32 %v364, %v365
        %v367 = vrot.slane %v366, 1
        %v368 = vadd.f32 %v366, %v367
        %v369 = vadd.f32 %v361, %v368
        %370 = vst [vmem:[#allocation2] sm:$0x1] %v369
        %p371 = scmp.eq.s32.totalorder %s27, 2
        // Predicated region
        $region53: #{tpu_custom_call.1} parent=35 // pred_check
          %p372 = pneg %p371
        $region54: #{tpu_custom_call.1} parent=35 // pred_check_branch
          %374 = sbr.rel (%p372) target = $region56
        $region55: #{tpu_custom_call.1} parent=35 // pred_region
          %v375 = vlaneseq
          %v376 = vand.u32 %v375, 127
          %v377 = vld [vmem:[#allocation2] sm:$0x1]
          %vm378 = vcmask 1040384
          %v379 = vsel %vm378, %v377, 0.0
          %380 = vadd.xlane.f32.xlu0 %v379
          %v381 = vpop.xlane.xlu0 %380
          %v382 = vrot.slane %v381, 4
          %v383 = vadd.f32 %v381, %v382
          %v384 = vrot.slane %v383, 2
          %v385 = vadd.f32 %v383, %v384
          %v386 = vrot.slane %v385, 1
          %v387 = vadd.f32 %v385, %v386
          %s388 = vtos %v387
          %vm389 = vcmp.eq.s32.totalorder %v376, 0
          %v390 = vstv %s388
          %v391 = vsel %vm389, %v390, 0.0
          %392 = vst [vmem:[%s312] sm:$0x1] %v391
          %p393 = scmp.eq.s32.totalorder %s26, 0
          // Predicated region
          $region57: #{tpu_custom_call.1} parent=55 // pred_check
            %p394 = pneg %p393
          $region58: #{tpu_custom_call.1} parent=55 // pred_check_branch
            %396 = sbr.rel (%p394) target = $region60
          $region59: #{tpu_custom_call.1} parent=55 // pred_region
            %v397 = vld [vmem:[#allocation3] sm:$0xf]
            %v398 = vmax.f32 %v397, 1e-06
            %v399 = vld [vmem:[%s1] sm:$0x1]
            %vm400 = vcmask 60416
            %v401 = vsel %vm400, %v398, 0.0
            %v402 = vrot.slane %v401, 4
            %v403 = vadd.f32 %v401, %v402
            %v404 = vrot.slane %v403, 2
            %v405 = vadd.f32 %v403, %v404
            %v406 = vrot.slane %v405, 1
            %v407 = vadd.f32 %v405, %v406
            %v408 = vrcp.pop %v398
            %v409 = vadd.f32 %v408, 0.0
            %v410 = vadd.f32 %v398, 1.0
            %v411 = vrcp.pop %v410
            %v412 = vadd.f32 %v409, %v411
            %v413 = vadd.f32 %v410, 1.0
            %v414 = vrcp.pop %v413
            %v415 = vadd.f32 %v412, %v414
            %v416 = vadd.f32 %v413, 1.0
            %v417 = vrcp.pop %v416
            %v418 = vadd.f32 %v415, %v417
            %v419 = vadd.f32 %v416, 1.0
            %v420 = vrcp.pop %v419
            %v421 = vadd.f32 %v418, %v420
            %v422 = vadd.f32 %v419, 1.0
            %v423 = vrcp.pop %v422
            %v424 = vadd.f32 %v421, %v423
            %v425 = vadd.f32 %v422, 1.0
            %v426 = vrcp.pop %v425
            %v427 = vmul.f32 %v426, %v426
            %v428 = vlog2.pop %v425
            %v429 = vmul.f32 %v428, 0.6931472
            %v430 = vmul.f32 %v426, 0.5
            %v431 = vsub.f32 %v429, %v430
            %v432 = vmul.f32 %v427, 0.003968254
            %v433 = vsub.f32 0.008333334, %v432
            %v434 = vmul.f32 %v427, %v433
            %v435 = vsub.f32 0.083333336, %v434
            %v436 = vmul.f32 %v427, %v435
            %v437 = vsub.f32 %v431, %v436
            %v438 = vsub.f32 %v437, %v424
            %v439 = vrcp.pop %v407
            %v440 = vadd.f32 %v439, 0.0
            %v441 = vadd.f32 %v407, 1.0
            %v442 = vrcp.pop %v441
            %v443 = vadd.f32 %v440, %v442
            %v444 = vadd.f32 %v441, 1.0
            %v445 = vrcp.pop %v444
            %v446 = vadd.f32 %v443, %v445
            %v447 = vadd.f32 %v444, 1.0
            %v448 = vrcp.pop %v447
            %v449 = vadd.f32 %v446, %v448
            %v450 = vadd.f32 %v447, 1.0
            %v451 = vrcp.pop %v450
            %v452 = vadd.f32 %v449, %v451
            %v453 = vadd.f32 %v450, 1.0
            %v454 = vrcp.pop %v453
            %v455 = vadd.f32 %v452, %v454
            %v456 = vadd.f32 %v453, 1.0
            %v457 = vrcp.pop %v456
            %v458 = vmul.f32 %v457, %v457
            %v459 = vlog2.pop %v456
            %v460 = vmul.f32 %v459, 0.6931472
            %v461 = vmul.f32 %v457, 0.5
            %v462 = vsub.f32 %v460, %v461
            %v463 = vmul.f32 %v458, 0.003968254
            %v464 = vsub.f32 0.008333334, %v463
            %v465 = vmul.f32 %v458, %v464
            %v466 = vsub.f32 0.083333336, %v465
            %v467 = vmul.f32 %v458, %v466
            %v468 = vsub.f32 %v462, %v467
            %v469 = vsub.f32 %v468, %v455
            %v470 = vlaneseq
            %v471 = vshrl.u32 %v470, 7
            %v472 = vsub.s32 0, %v471
            %v473 = vrot.slane %v399, %v472
            %vm474 = vcmp.eq.s32.totalorder %v339, %v473
            %v475 = vsel %vm474, %v438, 0.0
            %v476 = vsel %vm400, %v475, 0.0
            %v477 = vrot.slane %v476, 4
            %v478 = vadd.f32 %v476, %v477
            %v479 = vrot.slane %v478, 2
            %v480 = vadd.f32 %v478, %v479
            %v481 = vrot.slane %v480, 1
            %v482 = vadd.f32 %v480, %v481
            %v483 = vsub.f32 %v482, %v469
            %v484 = vsub.f32 0.0, %v483
            %v485 = vlog2.pop %v398
            %v486 = vmul.f32 %v485, 0.6931472
            %v487 = vadd.f32 %v486, 0.0
            %v488 = vlog2.pop %v410
            %v489 = vmul.f32 %v488, 0.6931472
            %v490 = vadd.f32 %v487, %v489
            %v491 = vlog2.pop %v413
            %v492 = vmul.f32 %v491, 0.6931472
            %v493 = vadd.f32 %v490, %v492
            %v494 = vlog2.pop %v416
            %v495 = vmul.f32 %v494, 0.6931472
            %v496 = vadd.f32 %v493, %v495
            %v497 = vlog2.pop %v419
            %v498 = vmul.f32 %v497, 0.6931472
            %v499 = vadd.f32 %v496, %v498
            %v500 = vlog2.pop %v422
            %v501 = vmul.f32 %v500, 0.6931472
            %v502 = vadd.f32 %v499, %v501
            %v503 = vsub.f32 %v425, 0.5
            %v504 = vmul.f32 %v503, %v429
            %v505 = vsub.f32 %v504, %v425
            %v506 = vadd.f32 %v505, 0.9189385
            %v507 = vmul.f32 %v427, 0.0007936508
            %v508 = vsub.f32 0.0027777778, %v507
            %v509 = vmul.f32 %v427, %v508
            %v510 = vsub.f32 0.083333336, %v509
            %v511 = vmul.f32 %v426, %v510
            %v512 = vadd.f32 %v506, %v511
            %v513 = vsub.f32 %v512, %v502
            %v514 = vsel %vm400, %v513, 0.0
            %v515 = vrot.slane %v514, 4
            %v516 = vadd.f32 %v514, %v515
            %v517 = vrot.slane %v516, 2
            %v518 = vadd.f32 %v516, %v517
            %v519 = vrot.slane %v518, 1
            %v520 = vadd.f32 %v518, %v519
            %v521 = vlog2.pop %v407
            %v522 = vmul.f32 %v521, 0.6931472
            %v523 = vadd.f32 %v522, 0.0
            %v524 = vlog2.pop %v441
            %v525 = vmul.f32 %v524, 0.6931472
            %v526 = vadd.f32 %v523, %v525
            %v527 = vlog2.pop %v444
            %v528 = vmul.f32 %v527, 0.6931472
            %v529 = vadd.f32 %v526, %v528
            %v530 = vlog2.pop %v447
            %v531 = vmul.f32 %v530, 0.6931472
            %v532 = vadd.f32 %v529, %v531
            %v533 = vlog2.pop %v450
            %v534 = vmul.f32 %v533, 0.6931472
            %v535 = vadd.f32 %v532, %v534
            %v536 = vlog2.pop %v453
            %v537 = vmul.f32 %v536, 0.6931472
            %v538 = vadd.f32 %v535, %v537
            %v539 = vsub.f32 %v456, 0.5
            %v540 = vmul.f32 %v539, %v460
            %v541 = vsub.f32 %v540, %v456
            %v542 = vadd.f32 %v541, 0.9189385
            %v543 = vmul.f32 %v458, 0.0007936508
            %v544 = vsub.f32 0.0027777778, %v543
            %v545 = vmul.f32 %v458, %v544
            %v546 = vsub.f32 0.083333336, %v545
            %v547 = vmul.f32 %v457, %v546
            %v548 = vadd.f32 %v542, %v547
            %v549 = vsub.f32 %v548, %v538
            %v550 = vsub.f32 %v520, %v549
            %v551 = vsub.f32 %v407, 4.0
            %v552 = vmul.f32 %v551, %v469
            %v553 = vadd.f32 %v550, %v552
            %v554 = vsub.f32 %v398, 1.0
            %v555 = vmul.f32 %v554, %v438
            %v556 = vsel %vm400, %v555, 0.0
            %v557 = vrot.slane %v556, 4
            %v558 = vadd.f32 %v556, %v557
            %v559 = vrot.slane %v558, 2
            %v560 = vadd.f32 %v558, %v559
            %v561 = vrot.slane %v560, 1
            %v562 = vadd.f32 %v560, %v561
            %v563 = vsub.f32 %v553, %v562
            %v564 = vmul.f32 %v563, 0.0001
            %v565 = vsub.f32 %v484, %v564
            %vm566 = vcmask 57344
            %v567 = vsel %vm566, %v565, 0.0
            %568 = vadd.xlane.f32.xlu0 %v567
            %v569 = vpop.xlane.xlu0 %568
            %v570 = vrot.slane %v569, 4
            %v571 = vadd.f32 %v569, %v570
            %v572 = vrot.slane %v571, 2
            %v573 = vadd.f32 %v571, %v572
            %v574 = vrot.slane %v573, 1
            %v575 = vadd.f32 %v573, %v574
            %s576 = vtos %v575
            %v577 = vrcp.pop 8.0
            %s578 = vtos %v577
            %s579 = smul.f32 %s576, %s578
            %v580 = vsel %vm566, %v484, 0.0
            %581 = vadd.xlane.f32.xlu0 %v580
            %v582 = vpop.xlane.xlu0 %581
            %v583 = vrot.slane %v582, 4
            %v584 = vadd.f32 %v582, %v583
            %v585 = vrot.slane %v584, 2
            %v586 = vadd.f32 %v584, %v585
            %v587 = vrot.slane %v586, 1
            %v588 = vadd.f32 %v586, %v587
            %s589 = vtos %v588
            %v590 = vrcp.pop 8.0
            %s591 = vtos %v590
            %s592 = smul.f32 %s589, %s591
            %v593 = vld [vmem:[%s312] sm:$0x1]
            %vm594 = vcmp.eq.s32.totalorder %v376, 1
            %v595 = vstv %s579
            %v596 = vsel %vm594, %v595, 0.0
            %v597 = vadd.f32 %v593, %v596
            %vm598 = vcmp.eq.s32.totalorder %v376, 2
            %v599 = vstv %s592
            %v600 = vsel %vm598, %v599, 0.0
            %v601 = vadd.f32 %v597, %v600
            %602 = vst [vmem:[%s312] sm:$0x1] %v601
          $region60: #{tpu_custom_call.1} parent=55 // pred_fallthru
            _
        $region56: #{tpu_custom_call.1} parent=35 // pred_fallthru
          _
        %s603 = sand.u32 %s152, 1
        %s604 = scalar_lea.sflag [#allocation5], %s603
        %s605 = sand.u32 %s152, 1
        %s606 = scalar_lea.vmem [#allocation9], %s605
        // Predicated region
        $region61: #{tpu_custom_call.1} parent=35 // pred_check
          %p607 = pneg %p162
        $region62: #{tpu_custom_call.1} parent=35 // pred_check_branch
          %609 = sbr.rel (%p607) target = $region64
        $region63: #{tpu_custom_call.1} parent=35 // pred_region
          %s611 = ssub.s32 16, 16
          %612 = vsyncadd %s604, %s611
          %s613 = smul.addr %s26, 16
          %s614 = scalar_lea.hbm %s4, %s613
          %s616 = sshll.u32 %s606, 4
          %s617 = int_to_ptr.vmem [resolvable:$true] %s616
          %619 = dma.vmem_to_hbm [thread:$0]  %s617, 16, %s614, %s604
        $region64: #{tpu_custom_call.1} parent=35 // pred_fallthru
          _
      $region36: #{tpu_custom_call.1} parent=5 // pred_fallthru
        _
      %p620 = scmp.le.s32.totalorder 2, %s17
      // Predicated region
      $region65: #{tpu_custom_call.1} parent=5 // pred_check
        %p621 = pneg %p620
      $region66: #{tpu_custom_call.1} parent=5 // pred_check_branch
        %623 = sbr.rel (%p621) target = $region68
      $region67: #{tpu_custom_call.1} parent=5 // pred_region
        %s624 = ssub.s32 %s17, 2
        // Predicated region
        $region69: #{tpu_custom_call.1} parent=67 // pred_check
          %p625 = pneg %p168
        $region70: #{tpu_custom_call.1} parent=67 // pred_check_branch
          %627 = sbr.rel (%p625) target = $region72
        $region71: #{tpu_custom_call.1} parent=67 // pred_region
          %s628 = sand.u32 %s153, 1
          %s629 = scalar_lea.sflag [#allocation5], %s628
          %s630 = sand.u32 %s153, 1
          %s631 = scalar_lea.vmem [#allocation9], %s630
          %632 = dma.done %s629, 16
        $region72: #{tpu_custom_call.1} parent=67 // pred_fallthru
          _
      $region68: #{tpu_custom_call.1} parent=5 // pred_fallthru
        _
    $region6: #{tpu_custom_call.1} parent=1 // loop_footer
      %s21 = sadd.s32 1, %s17
    $region7: #{tpu_custom_call.1} parent=1 // loop_footer_branch
      %16 = sbr.rel target = $region3
    $region8: #{tpu_custom_call.1} parent=1 // loop_exit
      _
    %633 = vsyncpa [#allocation4], 1
    %s634 = scalar_lea.sflag [#allocation4], 1
    %635 = vsyncpa %s634, 1
    %636 = vsyncpa [#allocation7], 1
    %s637 = scalar_lea.sflag [#allocation7], 1
    %638 = vsyncpa %s637, 1
    %639 = vsyncpa [#allocation5], 1
    %s640 = scalar_lea.sflag [#allocation5], 1
    %641 = vsyncpa %s640, 1

</llo_original>
